<compile_context>
chip_gen: v6e
topology: v6e:2x2x1
jax: 0.10.0
libtpu: 0.0.40
codegen_flags: <defaults>
</compile_context>

<pallas_src>
import functools

import jax
import jax.numpy as jnp
from jax.experimental import pallas as pl
from jax.experimental.pallas import tpu as pltpu

LANE = 128


def _round_up(a, b):
    return ((a + b - 1) // b) * b


def _round_down(a, b):
    return (a // b) * b


def _loss_values(x, *, loss_type, target_is_real, is_discriminator,
                 real_label, fake_label):
    """Elementwise GAN loss in float32 (shared by the kernel and the ragged tail)."""
    if loss_type == 'nsgan':
        # nn.BCELoss with a constant target; log terms clamped at -100 like PyTorch.
        t = float(real_label) if target_is_real else float(fake_label)
        if t == 1.0:
            return -jnp.maximum(jnp.log(x), -100.0)
        if t == 0.0:
            return -jnp.maximum(jnp.log(1.0 - x), -100.0)
        log_x = jnp.maximum(jnp.log(x), -100.0)
        log_1mx = jnp.maximum(jnp.log(1.0 - x), -100.0)
        return -(t * log_x + (1.0 - t) * log_1mx)
    if loss_type == 'lsgan':
        # nn.MSELoss against a constant target.
        t = float(real_label) if target_is_real else float(fake_label)
        d = x - t
        return d * d
    if loss_type == 'wgan':
        return -x if target_is_real else x
    if loss_type == 'hinge':
        # Matches PyTorch: `if is_discriminator:` treats None as False (generator branch).
        if is_discriminator:
            return (jnp.maximum(1.0 - x, 0.0) if target_is_real
                    else jnp.maximum(1.0 + x, 0.0))
        return -x
    raise NotImplementedError(f'GAN type {loss_type} is not found!')


def _gan_loss_kernel(x_ref, out_ref, *, loss_kwargs, rows, block_rows,
                     blocks_per_shard, needs_mask):
    i = pl.program_id(1)  # reduction ("arbitrary") axis

    @pl.when(i == 0)
    def _():
        out_ref[...] = jnp.zeros_like(out_ref)

    x = x_ref[...].astype(jnp.float32)
    val = _loss_values(x, **loss_kwargs)

    def _accumulate(v):
        # Fold (block_rows, 128) down to one (8, 128) tile with pure VALU adds;
        # the output block stays resident across the arbitrary axis.
        out_ref[...] += v.reshape(-1, 8, LANE).sum(axis=0)

    if needs_mask:
        g = pl.program_id(0) * blocks_per_shard + i      # virtual global block index
        rem_rows = rows - g * block_rows                 # valid rows in this block

        @pl.when(rem_rows >= block_rows)
        def _():
            _accumulate(val)

        @pl.when(rem_rows < block_rows)
        def _():
            # Cheap row mask: one (block_rows, 1) i32 iota vs. a scalar count.
            # rem_rows <= 0 for fully over-covered blocks -> all-False mask.
            row = jax.lax.broadcasted_iota(jnp.int32, (block_rows, 1), 0)
            _accumulate(jnp.where(row < rem_rows, val, 0.0))
    else:
        _accumulate(val)


def _tpu_defaults():
    """Returns (target block bytes, default num_shards) per TPU generation."""
    try:
        kind = jax.devices()[0].device_kind.lower()
    except Exception:
        kind = ''
    if 'v7' in kind:
        # 2 TensorCores, ~3.2 TB/s HBM: big blocks + 2-way core split.
        return 8 * 1024 * 1024, 2
    if 'v5e' in kind or 'v5 lite' in kind or 'v5lite' in kind:
        # 1 TC, ~0.8 TB/s HBM, 16 MiB default scoped VMEM.
        return 2 * 1024 * 1024, 1
    # v6e / other: 1 TC, 32 MiB default scoped VMEM.
    return 4 * 1024 * 1024, 1


def gan_loss(input_data, target_is_real, *, loss_type='nsgan',
             is_discriminator=None, real_label=1.0, fake_label=0.0,
             block_rows=None, num_shards=None):
    """Pallas implementation of GANLoss.forward.

    input_data: any-shaped float array (NCHW discriminator output in the tests).
    target_is_real / is_discriminator: Python bools (static, as in PyTorch).
    Returns a scalar float32 loss (mean reduction).
    """
    x = jnp.asarray(input_data)
    if not jnp.issubdtype(x.dtype, jnp.floating):
        x = x.astype(jnp.float32)

    loss_kwargs = dict(loss_type=loss_type, target_is_real=bool(target_is_real),
                       is_discriminator=is_discriminator,
                       real_label=float(real_label), fake_label=float(fake_label))

    flat = x.reshape(-1)
    n_valid = int(flat.shape[0])
    assert 0 < n_valid < 2**31

    itemsize = jnp.dtype(flat.dtype).itemsize
    sub = {4: 8, 2: 16, 1: 32}.get(itemsize, 8)

    rows = n_valid // LANE
    n_bulk = rows * LANE
    tail_count = n_valid - n_bulk          # < 128; nonzero only for ragged inputs

    # Ragged tail (< 128 elements) is reduced with plain jnp ops so the bulk is
    # never padded (jnp.pad would re-read + re-write the whole tensor in HBM).
    tail_sum = None
    if tail_count > 0:
        tail_vals = _loss_values(flat[n_bulk:].astype(jnp.float32), **loss_kwargs)
        tail_sum = jnp.sum(tail_vals)

    if rows == 0:
        # Tiny input (< 128 elements): no kernel needed.
        return tail_sum / jnp.float32(n_valid)

    # Free metadata reshape when n_valid % 128 == 0; for ragged inputs the prefix
    # slice may materialize a bulk copy (no worse than the old pad, ragged only).
    bulk = flat if tail_count == 0 else flat[:n_bulk]
    x2d = bulk.reshape(rows, LANE)

    # Hardware-aware block sizing (by bytes) and TensorCore sharding.
    tgt_bytes, default_shards = _tpu_defaults()
    if num_shards is None:
        num_shards = default_shards
    if block_rows is None:
        block_rows = max(sub, _round_down(tgt_bytes // (LANE * itemsize), 32))
    else:
        block_rows = max(sub, _round_up(int(block_rows), sub))
    # Never use a block wildly larger than the data (block stays a multiple of
    # the sublane packing so the in-kernel (..,8,128) fold is layout-friendly).
    block_rows = min(block_rows, _round_up(rows, sub))

    total_blocks = pl.cdiv(rows, block_rows)
    num_shards = max(1, min(int(num_shards), total_blocks))
    blocks_per_shard = pl.cdiv(total_blocks, num_shards)

    coverage_rows = num_shards * blocks_per_shard * block_rows
    needs_mask = coverage_rows > rows
    over_covered = num_shards * blocks_per_shard > total_blocks

    if over_covered:
        # Over-covered steps (only at the end of the last shard) clamp to the
        # last block, i.e. repeat the previous step's block index, so Pallas
        # skips the redundant DMA; their contribution is masked to zero.
        def x_index_map(s, i):
            return (jnp.minimum(s * blocks_per_shard + i, total_blocks - 1), 0)
    else:
        def x_index_map(s, i):
            return (s * blocks_per_shard + i, 0)

    kernel = functools.partial(
        _gan_loss_kernel, loss_kwargs=loss_kwargs, rows=rows,
        block_rows=block_rows, blocks_per_shard=blocks_per_shard,
        needs_mask=needs_mask)

    compiler_kwargs = dict(dimension_semantics=("parallel", "arbitrary"))
    dbl_buf_bytes = 2 * block_rows * LANE * itemsize
    if dbl_buf_bytes > 14 * 1024 * 1024:
        # Only relevant when an override pushes past the smallest (v5e) scoped
        # VMEM default; stay well under v7x's 64 MiB physical VMEM.
        compiler_kwargs["vmem_limit_bytes"] = min(
            max(dbl_buf_bytes + 8 * 1024 * 1024, 32 * 1024 * 1024),
            48 * 1024 * 1024)

    partials = pl.pallas_call(
        kernel,
        out_shape=jax.ShapeDtypeStruct((num_shards * 8, LANE), jnp.float32),
        grid_spec=pltpu.PrefetchScalarGridSpec(
            num_scalar_prefetch=0,
            grid=(num_shards, blocks_per_shard),
            in_specs=[pl.BlockSpec((block_rows, LANE), x_index_map)],
            out_specs=pl.BlockSpec((8, LANE), lambda s, i: (s, 0)),
        ),
        compiler_params=pltpu.CompilerParams(**compiler_kwargs),
    )(x2d)

    # Tiny final cross-lane reduction + mean in the wrapper.
    total = jnp.sum(partials)
    if tail_sum is not None:
        total = total + tail_sum
    return total / jnp.float32(n_valid)


def _reference(x, target_is_real, loss_type, is_discriminator=None,
               real_label=1.0, fake_label=0.0):
    x = jnp.asarray(x, jnp.float32)
    if loss_type == 'nsgan':
        t = real_label if target_is_real else fake_label
        lx = jnp.maximum(jnp.log(x), -100.0)
        l1mx = jnp.maximum(jnp.log(1.0 - x), -100.0)
        return jnp.mean(-(t * lx + (1.0 - t) * l1mx))
    if loss_type == 'lsgan':
        t = real_label if target_is_real else fake_label
        return jnp.mean((x - t) ** 2)
    if loss_type == 'wgan':
        return -jnp.mean(x) if target_is_real else jnp.mean(x)
    if loss_type == 'hinge':
        if is_discriminator:
            return (jnp.mean(jnp.maximum(1.0 - x, 0.0)) if target_is_real
                    else jnp.mean(jnp.maximum(1.0 + x, 0.0)))
        return jnp.mean(-x)
    raise NotImplementedError(loss_type)


if __name__ == "__main__":
    key = jax.random.PRNGKey(0)
    k0, k1, k2, k3 = jax.random.split(key, 4)

    # Discriminator output, NCHW (PyTorch convention), small shapes.
    logits = jax.random.normal(k0, (2, 4, 16, 16), dtype=jnp.float32)     # 2048 elems
    probs = jax.nn.sigmoid(logits)                                        # nsgan input in (0, 1)

    # Ragged shape (1155 elements): exercises the no-pad bulk + jnp tail path.
    odd_logits = jax.random.normal(k1, (3, 5, 7, 11), dtype=jnp.float32)
    odd_probs = jax.nn.sigmoid(odd_logits)

    # bf16 inputs: native-dtype kernel reads, in-register upcast.
    logits_bf16 = logits.astype(jnp.bfloat16)
    # Multiple of 128 but NOT of 2048: the relaxed alignment (no pad) path for bf16.
    logits_bf16_1536 = jax.random.normal(k2, (2, 4, 16, 12), dtype=jnp.bfloat16)

    # Slightly larger f32 tensor (3072 elems = 24 rows) to exercise the
    # over-covered clamped-index-map path with block_rows=8 / num_shards=2.
    logits_mid = jax.random.normal(k3, (3, 4, 16, 16), dtype=jnp.float32)

    # Sub-128-element input: wrapper-only path (no kernel).
    tiny = jax.random.normal(key, (5, 7), dtype=jnp.float32)

    cases = [
        # (loss_type, input, target_is_real, is_disc, extra kwargs)
        ('nsgan', probs, True, None, {}),
        ('nsgan', probs, False, None, {}),
        ('lsgan', logits, True, None, {}),
        ('lsgan', logits, False, None, {}),
        ('wgan', logits, True, None, {}),
        ('wgan', logits, False, None, {}),
        ('hinge', logits, True, True, {}),
        ('hinge', logits, False, True, {}),
        ('hinge', logits, True, False, {}),
        # Multi-block, 2-shard grid on a small input (exact tiling, no mask).
        ('lsgan', logits, True, None, {'block_rows': 8, 'num_shards': 2}),
        ('nsgan', probs, True, None, {'block_rows': 8, 'num_shards': 2}),
        # Over-covered shard steps (clamped index_map + masked block).
        ('lsgan', logits_mid, True, None, {'block_rows': 8, 'num_shards': 2}),
        ('hinge', logits_mid, False, True, {'block_rows': 8, 'num_shards': 2}),
        # Ragged (non-128-multiple) inputs: partial-block row mask + jnp tail.
        ('nsgan', odd_probs, True, None, {}),
        ('lsgan', odd_logits, False, None, {}),
        ('hinge', odd_logits, True, True, {'block_rows': 8, 'num_shards': 2}),
        # Native bf16 inputs.
        ('lsgan', logits_bf16, True, None, {}),
        ('hinge', logits_bf16, False, True, {}),
        ('lsgan', logits_bf16_1536, True, None, {}),
        # Sub-128-element input (wrapper-only path).
        ('lsgan', tiny, False, None, {}),
    ]

    for loss_type, x, target_is_real, is_disc, kwargs in cases:
        got = jax.block_until_ready(
            gan_loss(x, target_is_real, loss_type=loss_type,
                     is_discriminator=is_disc, **kwargs))
        want = _reference(x, target_is_real, loss_type, is_disc)
        assert jnp.allclose(got, want, rtol=1e-5, atol=1e-5), (
            loss_type, target_is_real, is_disc, kwargs, float(got), float(want))

    print("KERNEL_OK")
</pallas_src>

<mosaic_0001>
module attributes {stable_mosaic.version = 11 : i64} {
  func.func @_gan_loss_kernel(%arg0: i32, %arg1: i32, %arg2: memref<16x128xf32, #tpu.memory_space<vmem>>, %arg3: memref<8x128xf32, #tpu.memory_space<vmem>>) attributes {dimension_semantics = [#tpu.dimension_semantics<parallel>, #tpu.dimension_semantics<arbitrary>], iteration_bounds = array<i64: 1, 1>, scalar_prefetch = 0 : i64, scratch_operands = 0 : i64, tpu.core_type = #tpu.core_type<tc>, window_params = [{transform_indices = @transform_0, window_bounds = array<i64: 16, 128>}, {transform_indices = @transform_1, window_bounds = array<i64: 8, 128>}]} {
    %c0_i32 = arith.constant 0 : i32
    %0 = arith.cmpi eq, %arg1, %c0_i32 : i32
    %1 = arith.extui %0 : i1 to i32
    %c0_i32_0 = arith.constant 0 : i32
    %2 = arith.cmpi ne, %1, %c0_i32_0 : i32
    scf.if %2 {
      %cst_8 = arith.constant 0.000000e+00 : f32
      %14 = vector.broadcast %cst_8 : f32 to vector<8x128xf32>
      %c0_9 = arith.constant 0 : index
      %c0_10 = arith.constant 0 : index
      %15 = vector.load %arg3[%c0_9, %c0_10] : memref<8x128xf32, #tpu.memory_space<vmem>>, vector<8x128xf32>
      tpu.vector_store %arg3[%c0_9, %c0_10], %14 {strides = array<i32>} : memref<8x128xf32, #tpu.memory_space<vmem>>, vector<8x128xf32>,
    } else {
    }
    %c0 = arith.constant 0 : index
    %c0_1 = arith.constant 0 : index
    %3 = vector.load %arg2[%c0, %c0_1] : memref<16x128xf32, #tpu.memory_space<vmem>>, vector<16x128xf32>
    %4 = math.log %3 : vector<16x128xf32>
    %cst = arith.constant -1.000000e+02 : f32
    %5 = vector.broadcast %cst : f32 to vector<16x128xf32>
    %6 = arith.maximumf %4, %5 : vector<16x128xf32>
    %cst_2 = arith.constant 0.000000e+00 : f32
    %7 = vector.broadcast %cst_2 : f32 to vector<16x128xf32>
    %8 = arith.subf %7, %6 : vector<16x128xf32>
    %c0_3 = arith.constant 0 : index
    %c0_4 = arith.constant 0 : index
    %9 = vector.load %arg3[%c0_3, %c0_4] : memref<8x128xf32, #tpu.memory_space<vmem>>, vector<8x128xf32>
    %10 = vector.shape_cast %8 : vector<16x128xf32> to vector<2x8x128xf32>
    %cst_5 = arith.constant dense<0.000000e+00> : vector<8x128xf32>
    %11 = vector.multi_reduction <add>, %10, %cst_5 [0] : vector<2x8x128xf32> to vector<8x128xf32>
    %12 = arith.addf %9, %11 : vector<8x128xf32>
    %c0_6 = arith.constant 0 : index
    %c0_7 = arith.constant 0 : index
    %13 = vector.load %arg3[%c0_6, %c0_7] : memref<8x128xf32, #tpu.memory_space<vmem>>, vector<8x128xf32>
    tpu.vector_store %arg3[%c0_6, %c0_7], %12 {strides = array<i32>} : memref<8x128xf32, #tpu.memory_space<vmem>>, vector<8x128xf32>,
    return
  }
  func.func @transform_0(%arg0: i32, %arg1: i32) -> (i32, i32) {
    %c1_i32 = arith.constant 1 : i32
    %0 = arith.muli %arg0, %c1_i32 : i32
    %1 = arith.addi %0, %arg1 : i32
    %c0_i32 = arith.constant 0 : i32
    %c0_i32_0 = arith.constant 0 : i32
    return %1, %c0_i32 : i32, i32
  }
  func.func @transform_1(%arg0: i32, %arg1: i32) -> (i32, i32) {
    %c0_i32 = arith.constant 0 : i32
    %c0_i32_0 = arith.constant 0 : i32
    return %arg0, %c0_i32 : i32, i32
  }
}

</mosaic_0001>

<llo_original>
// kernel: tpu_custom_call.1
$region0: #{tpu_custom_call.1}
  #allocation0 [shape = 'u32[]', space=smem, size = 0x4, offset = 0x4, fixed_abs, tag = 'smem constant byte address 0x4 - core index']
  #allocation1 [shape = 'u32[144,128]{1,0:T(1,128)}', space=vmem, size = 0x12000, scoped, tag = 'internal scratch']
  %s0 = inlined_call_operand.hbm [shape: f32[16,128], index: 0, kind: input, shape index: {}]
  %s1 = inlined_call_operand.hbm [shape: f32[8,128], index: 1, kind: output, shape index: {}]
  %s2 = sld [smem:[#allocation0]]
  $region22: #{tpu_custom_call.1} parent=0
    _
  %s4 = ssub.s32 1, %s2
  %s5 = scalar_select 0, %s4, %s2
  $region1: #{tpu_custom_call.1} parent=0
    #allocation2 [shape = 'u8[8192]{0}', space=vmem, size = 0x2000, scoped, tag = 'input window, operand 0, single buffered']
    #allocation3 [shape = 's32[1]{0}', space=sflag, size = 0x4, scoped, tag = 'scoped memory for tpu_custom_call.1']
    #allocation4 [shape = 's32[1]{0}', space=sflag, size = 0x4, scoped, tag = 'scoped memory for tpu_custom_call.1']
    #allocation5 [shape = 'u8[4096]{0}', space=vmem, size = 0x1000, scoped, tag = 'output window, operand 0, single buffered']
    %6 = vsyncpa [#allocation3], 0
    %7 = vsyncpa [#allocation4], 0
    // Predicated region
    $region2: #{tpu_custom_call.1} parent=1 // pred_check
      _
    $region3: #{tpu_custom_call.1} parent=1 // pred_check_branch
      %9 = sbr.rel (0) target = $region5
    $region4: #{tpu_custom_call.1} parent=1 // pred_region
      %s10 = sadd.s32 0, 0
      %s11 = smul.u32 2, %s10
      %s13 = ssub.s32 256, 256
      %14 = vsyncadd [#allocation3], %s13
      %s15 = smul.addr %s11, 128
      %s16 = scalar_lea.hbm %s0, %s15
      %s17 = sshll.u32 [#allocation2], 4
      %s18 = int_to_ptr.vmem [resolvable:$true] %s17
      %23 = dma.hbm_to_vmem [thread:$0]  %s16, 256, %s18, [#allocation3], 128, 128, 8
    $region5: #{tpu_custom_call.1} parent=1 // pred_fallthru
      _
    // Predicated region
    $region6: #{tpu_custom_call.1} parent=1 // pred_check
      _
    $region7: #{tpu_custom_call.1} parent=1 // pred_check_branch
      %25 = sbr.rel (0) target = $region9
    $region8: #{tpu_custom_call.1} parent=1 // pred_region
      %26 = dma.done [#allocation3], 256
    $region9: #{tpu_custom_call.1} parent=1 // pred_fallthru
      _
    %s27 = sadd.s32 0, 0
    %s28 = smul.u32 2, %s27
    %p29 = scmp.eq.s32.totalorder 0, 0
    // Predicated region
    $region10: #{tpu_custom_call.1} parent=1 // pred_check
      %p30 = pneg %p29
    $region11: #{tpu_custom_call.1} parent=1 // pred_check_branch
      %32 = sbr.rel (%p30) target = $region13
    $region12: #{tpu_custom_call.1} parent=1 // pred_region
      %33 = vst [vmem:[#allocation5] sm:$0xff] 0.0
    $region13: #{tpu_custom_call.1} parent=1 // pred_fallthru
      _
    %v34 = vld [vmem:[#allocation2] sm:$0xff]
    %v35 = vld [vmem:[#allocation2 + $0x8] sm:$0xff]
    %v36 = vlog2.pop %v34
    %v37 = vmul.f32 %v36, 0.6931472
    %v38 = vlog2.pop %v35
    %v39 = vmul.f32 %v38, 0.6931472
    %v40 = vmax.f32 %v37, -100.0
    %v41 = vmax.f32 %v39, -100.0
    %v42 = vsub.f32 0.0, %v40
    %v43 = vsub.f32 0.0, %v41
    %v44 = vld [vmem:[#allocation5] sm:$0xff]
    %v45 = vadd.f32 %v42, %v43
    %v46 = vadd.f32 %v44, %v45
    %47 = vst [vmem:[#allocation5] sm:$0xff] %v46
    // Predicated region
    $region14: #{tpu_custom_call.1} parent=1 // pred_check
      _
    $region15: #{tpu_custom_call.1} parent=1 // pred_check_branch
      %49 = sbr.rel (0) target = $region17
    $region16: #{tpu_custom_call.1} parent=1 // pred_region
      %s51 = ssub.s32 128, 128
      %52 = vsyncadd [#allocation4], %s51
      %s54 = sshll.u32 [#allocation5], 4
      %s55 = int_to_ptr.vmem [resolvable:$true] %s54
      %57 = dma.vmem_to_hbm [thread:$0]  %s55, 128, %s1, [#allocation4]
    $region17: #{tpu_custom_call.1} parent=1 // pred_fallthru
      _
    // Predicated region
    $region18: #{tpu_custom_call.1} parent=1 // pred_check
      _
    $region19: #{tpu_custom_call.1} parent=1 // pred_check_branch
      %59 = sbr.rel (0) target = $region21
    $region20: #{tpu_custom_call.1} parent=1 // pred_region
      %60 = dma.done [#allocation4], 128
    $region21: #{tpu_custom_call.1} parent=1 // pred_fallthru
      _
    %61 = vsyncpa [#allocation3], 1
    %62 = vsyncpa [#allocation4], 1

</llo_original>
